<compile_context>
chip_gen: v5e
topology: v5e:2x2
jax: 0.10.0
libtpu: 0.0.40
codegen_flags: <defaults>
</compile_context>

<pallas_src>
import functools

import jax
import jax.numpy as jnp
from jax import lax
from jax.experimental import pallas as pl
from jax.experimental.pallas import tpu as pltpu

LANE = 128
MAX_BLOCK_ROWS = 2048   # (2048,128) f32 block = 1 MiB per input


def _dice_bce_kernel(x_ref, t_ref, out_ref, acc_ref, *,
                     n_valid, block_rows, nb_per_split):
    c = pl.program_id(0)          # parallel split (megacore axis)
    j = pl.program_id(1)          # sequential reduction axis

    @pl.when(j == 0)
    def _():
        acc_ref[...] = jnp.zeros_like(acc_ref)

    x = x_ref[...].astype(jnp.float32)
    t = t_ref[...].astype(jnp.float32)

    # In-kernel validity mask: global element index < n_valid. Covers the
    # (<=1023-element) lane pad, partial tail blocks and any duplicated
    # (clamped) blocks -- no third HBM stream, no int32 overflow.
    blk = c * nb_per_split + j
    row0 = blk * block_rows
    grow = row0 + lax.broadcasted_iota(jnp.int32, (block_rows, LANE), 0)
    lane = lax.broadcasted_iota(jnp.int32, (block_rows, LANE), 1)
    full_rows = n_valid // LANE
    rem = n_valid % LANE
    valid = (grow < full_rows) | ((grow == full_rows) & (lane < rem))

    # Numerically stable sigmoid + BCE from logits (2 EUP transcendentals):
    #   -log(p) = softplus(-x), -log(1-p) = softplus(x)
    # PyTorch's F.binary_cross_entropy clamps the log terms at -100.
    e = jnp.exp(-jnp.abs(x))
    log1pe = jnp.log1p(e)
    p = jnp.where(x >= 0, 1.0, e) / (1.0 + e)                    # sigmoid(x)
    sp_neg = jnp.minimum(jnp.maximum(-x, 0.0) + log1pe, 100.0)   # -log(p)
    sp_pos = jnp.minimum(jnp.maximum(x, 0.0) + log1pe, 100.0)    # -log(1-p)
    bce = t * sp_neg + (1.0 - t) * sp_pos

    zero = jnp.zeros_like(x)
    pt = jnp.where(valid, p * t, zero)
    ppt = jnp.where(valid, p + t, zero)
    bce = jnp.where(valid, bce, zero)

    # Fold (block_rows,128) -> (8,128): pure VPU adds; the expensive
    # cross-lane/sublane reduction is deferred to the epilogue.
    fold = block_rows // 8
    acc_ref[0] += jnp.sum(pt.reshape(fold, 8, LANE), axis=0)
    acc_ref[1] += jnp.sum(ppt.reshape(fold, 8, LANE), axis=0)
    acc_ref[2] += jnp.sum(bce.reshape(fold, 8, LANE), axis=0)

    @pl.when(j == pl.num_programs(1) - 1)
    def _():
        out_ref[0] = acc_ref[...]


def dice_bce_loss(inputs, targets, smooth=1.0):
    """Pallas implementation of DiceBCELoss.forward. Returns a scalar f32."""
    x = inputs.reshape(-1)
    t = targets.reshape(-1)
    n = x.shape[0]

    # Pad only to a whole number of (8,128) vregs (<= 1023 elements); for
    # typical NCHW shapes this is a no-op (no extra HBM copy).
    chunk = 8 * LANE
    pad = (-n) % chunk
    if pad:
        x = jnp.pad(x, (0, pad))
        t = jnp.pad(t, (0, pad))
    rows = (n + pad) // LANE

    x2 = x.reshape(rows, LANE)
    t2 = t.reshape(rows, LANE)

    block_rows = min(MAX_BLOCK_ROWS, rows)        # multiple of 8
    num_blocks = pl.cdiv(rows, block_rows)
    splits = 2 if num_blocks >= 2 else 1          # use both v7x TensorCores
    nb = pl.cdiv(num_blocks, splits)

    def in_map(c, j):
        # Clamp so duplicated tail blocks stay in bounds; the kernel masks
        # their contribution to exactly zero.
        return (jnp.minimum(c * nb + j, num_blocks - 1), 0)

    tile_spec = pl.BlockSpec((block_rows, LANE), in_map)

    partials = pl.pallas_call(
        functools.partial(_dice_bce_kernel, n_valid=n,
                          block_rows=block_rows, nb_per_split=nb),
        out_shape=jax.ShapeDtypeStruct((splits, 3, 8, LANE), jnp.float32),
        grid=(splits, nb),
        in_specs=[tile_spec, tile_spec],
        out_specs=pl.BlockSpec((1, 3, 8, LANE), lambda c, j: (c, 0, 0, 0)),
        scratch_shapes=[pltpu.VMEM((3, 8, LANE), jnp.float32)],
        compiler_params=pltpu.CompilerParams(
            dimension_semantics=("parallel", "arbitrary")),
    )(x2, t2)

    # Tiny epilogue: single cross-lane reduction of the (splits,3,8,128)
    # partials + scalar Dice/BCE math.
    sums = jnp.sum(partials, axis=(0, 2, 3))   # [sum(p*t), sum(p)+sum(t), sum(bce)]
    smooth = jnp.float32(smooth)
    dice_loss = 1.0 - (2.0 * sums[0] + smooth) / (sums[1] + smooth)
    bce_mean = sums[2] / jnp.float32(n)        # n == 0 -> nan, same as torch mean
    return bce_mean + dice_loss


def _reference(inputs, targets, smooth=1.0):
    p = jax.nn.sigmoid(inputs).reshape(-1)
    t = targets.reshape(-1)
    inter = jnp.sum(p * t)
    dice = 1.0 - (2.0 * inter + smooth) / (jnp.sum(p) + jnp.sum(t) + smooth)
    bce = jnp.mean(-(t * jnp.log(p) + (1.0 - t) * jnp.log1p(-p)))
    return bce + dice


if __name__ == "__main__":
    key = jax.random.PRNGKey(0)
    k1, k2 = jax.random.split(key)
    # shapes consistent with a segmentation logit/target pair (NCHW)
    inputs = jax.random.normal(k1, (2, 4, 16, 16), dtype=jnp.float32)
    targets = (jax.random.uniform(k2, (2, 4, 16, 16)) > 0.5).astype(jnp.float32)

    loss = dice_bce_loss(inputs, targets, smooth=1.0)
    loss = jax.block_until_ready(loss)

    ref = _reference(inputs, targets, smooth=1.0)
    assert jnp.allclose(loss, ref, rtol=1e-5, atol=1e-5), (loss, ref)
    print("KERNEL_OK")
</pallas_src>

<mosaic_0001>
module attributes {stable_mosaic.version = 11 : i64} {
  func.func @_dice_bce_kernel(%arg0: i32, %arg1: i32, %arg2: memref<16x128xf32, #tpu.memory_space<vmem>>, %arg3: memref<16x128xf32, #tpu.memory_space<vmem>>, %arg4: memref<1x3x8x128xf32, #tpu.memory_space<vmem>>, %arg5: memref<3x8x128xf32, #tpu.memory_space<vmem>>) attributes {dimension_semantics = [#tpu.dimension_semantics<parallel>, #tpu.dimension_semantics<arbitrary>], iteration_bounds = array<i64: 1, 1>, scalar_prefetch = 0 : i64, scratch_operands = 1 : i64, tpu.core_type = #tpu.core_type<tc>, window_params = [{transform_indices = @transform_0, window_bounds = array<i64: 16, 128>}, {transform_indices = @transform_1, window_bounds = array<i64: 16, 128>}, {transform_indices = @transform_2, window_bounds = array<i64: 1, 3, 8, 128>}]} {
    %c0_i32 = arith.constant 0 : i32
    %0 = arith.cmpi eq, %arg1, %c0_i32 : i32
    %1 = arith.extui %0 : i1 to i32
    %c0_i32_0 = arith.constant 0 : i32
    %2 = arith.cmpi ne, %1, %c0_i32_0 : i32
    scf.if %2 {
      %cst_38 = arith.constant 0.000000e+00 : f32
      %82 = vector.broadcast %cst_38 : f32 to vector<3x8x128xf32>
      %c0_39 = arith.constant 0 : index
      %c0_40 = arith.constant 0 : index
      %c0_41 = arith.constant 0 : index
      %83 = vector.load %arg5[%c0_39, %c0_40, %c0_41] : memref<3x8x128xf32, #tpu.memory_space<vmem>>, vector<3x8x128xf32>
      tpu.vector_store %arg5[%c0_39, %c0_40, %c0_41], %82 {strides = array<i32>} : memref<3x8x128xf32, #tpu.memory_space<vmem>>, vector<3x8x128xf32>,
    } else {
    }
    %c0 = arith.constant 0 : index
    %c0_1 = arith.constant 0 : index
    %3 = vector.load %arg2[%c0, %c0_1] : memref<16x128xf32, #tpu.memory_space<vmem>>, vector<16x128xf32>
    %c0_2 = arith.constant 0 : index
    %c0_3 = arith.constant 0 : index
    %4 = vector.load %arg3[%c0_2, %c0_3] : memref<16x128xf32, #tpu.memory_space<vmem>>, vector<16x128xf32>
    %c1_i32 = arith.constant 1 : i32
    %5 = arith.muli %arg0, %c1_i32 : i32
    %6 = arith.addi %5, %arg1 : i32
    %c16_i32 = arith.constant 16 : i32
    %7 = arith.muli %6, %c16_i32 : i32
    %8 = tpu.iota {dimensions = array<i32: 0>} : vector<16x128xi32>
    %9 = vector.broadcast %7 : i32 to vector<16x128xi32>
    %10 = arith.addi %9, %8 : vector<16x128xi32>
    %11 = tpu.iota {dimensions = array<i32: 1>} : vector<16x128xi32>
    %c16_i32_4 = arith.constant 16 : i32
    %12 = vector.broadcast %c16_i32_4 : i32 to vector<16x128xi32>
    %13 = arith.cmpi slt, %10, %12 : vector<16x128xi32>
    %c16_i32_5 = arith.constant 16 : i32
    %14 = vector.broadcast %c16_i32_5 : i32 to vector<16x128xi32>
    %15 = arith.cmpi eq, %10, %14 : vector<16x128xi32>
    %c0_i32_6 = arith.constant 0 : i32
    %16 = vector.broadcast %c0_i32_6 : i32 to vector<16x128xi32>
    %17 = arith.cmpi slt, %11, %16 : vector<16x128xi32>
    %18 = arith.andi %15, %17 : vector<16x128xi1>
    %19 = arith.ori %13, %18 : vector<16x128xi1>
    %20 = math.absf %3 : vector<16x128xf32>
    %cst = arith.constant 0.000000e+00 : f32
    %21 = vector.broadcast %cst : f32 to vector<16x128xf32>
    %22 = arith.subf %21, %20 : vector<16x128xf32>
    %23 = math.exp %22 : vector<16x128xf32>
    %24 = math.log1p %23 : vector<16x128xf32>
    %cst_7 = arith.constant 0.000000e+00 : f32
    %25 = vector.broadcast %cst_7 : f32 to vector<16x128xf32>
    %26 = arith.cmpf oge, %3, %25 : vector<16x128xf32>
    %cst_8 = arith.constant 1.000000e+00 : f32
    %27 = vector.broadcast %cst_8 : f32 to vector<16x128xf32>
    %28 = arith.select %26, %27, %23 : vector<16x128xi1>, vector<16x128xf32>
    %cst_9 = arith.constant 1.000000e+00 : f32
    %29 = vector.broadcast %cst_9 : f32 to vector<16x128xf32>
    %30 = arith.addf %29, %23 : vector<16x128xf32>
    %31 = arith.divf %28, %30 : vector<16x128xf32>
    %cst_10 = arith.constant 0.000000e+00 : f32
    %32 = vector.broadcast %cst_10 : f32 to vector<16x128xf32>
    %33 = arith.subf %32, %3 : vector<16x128xf32>
    %cst_11 = arith.constant 0.000000e+00 : f32
    %34 = vector.broadcast %cst_11 : f32 to vector<16x128xf32>
    %35 = arith.maximumf %33, %34 : vector<16x128xf32>
    %36 = arith.addf %35, %24 : vector<16x128xf32>
    %cst_12 = arith.constant 1.000000e+02 : f32
    %37 = vector.broadcast %cst_12 : f32 to vector<16x128xf32>
    %38 = arith.minimumf %36, %37 : vector<16x128xf32>
    %cst_13 = arith.constant 0.000000e+00 : f32
    %39 = vector.broadcast %cst_13 : f32 to vector<16x128xf32>
    %40 = arith.maximumf %3, %39 : vector<16x128xf32>
    %41 = arith.addf %40, %24 : vector<16x128xf32>
    %cst_14 = arith.constant 1.000000e+02 : f32
    %42 = vector.broadcast %cst_14 : f32 to vector<16x128xf32>
    %43 = arith.minimumf %41, %42 : vector<16x128xf32>
    %44 = arith.mulf %4, %38 : vector<16x128xf32>
    %cst_15 = arith.constant 1.000000e+00 : f32
    %45 = vector.broadcast %cst_15 : f32 to vector<16x128xf32>
    %46 = arith.subf %45, %4 : vector<16x128xf32>
    %47 = arith.mulf %46, %43 : vector<16x128xf32>
    %48 = arith.addf %44, %47 : vector<16x128xf32>
    %cst_16 = arith.constant 0.000000e+00 : f32
    %49 = vector.broadcast %cst_16 : f32 to vector<16x128xf32>
    %50 = arith.mulf %31, %4 : vector<16x128xf32>
    %51 = arith.select %19, %50, %49 : vector<16x128xi1>, vector<16x128xf32>
    %52 = arith.addf %31, %4 : vector<16x128xf32>
    %53 = arith.select %19, %52, %49 : vector<16x128xi1>, vector<16x128xf32>
    %54 = arith.select %19, %48, %49 : vector<16x128xi1>, vector<16x128xf32>
    %c0_17 = arith.constant 0 : index
    %c0_18 = arith.constant 0 : index
    %c0_19 = arith.constant 0 : index
    %55 = vector.load %arg5[%c0_17, %c0_18, %c0_19] : memref<3x8x128xf32, #tpu.memory_space<vmem>>, vector<1x8x128xf32>
    %56 = vector.shape_cast %55 : vector<1x8x128xf32> to vector<8x128xf32>
    %57 = vector.shape_cast %51 : vector<16x128xf32> to vector<2x8x128xf32>
    %cst_20 = arith.constant dense<0.000000e+00> : vector<8x128xf32>
    %58 = vector.multi_reduction <add>, %57, %cst_20 [0] : vector<2x8x128xf32> to vector<8x128xf32>
    %59 = arith.addf %56, %58 : vector<8x128xf32>
    %c0_21 = arith.constant 0 : index
    %c0_22 = arith.constant 0 : index
    %c0_23 = arith.constant 0 : index
    %60 = vector.load %arg5[%c0_21, %c0_22, %c0_23] : memref<3x8x128xf32, #tpu.memory_space<vmem>>, vector<1x8x128xf32>
    %61 = vector.shape_cast %60 : vector<1x8x128xf32> to vector<8x128xf32>
    %62 = vector.shape_cast %59 : vector<8x128xf32> to vector<1x8x128xf32>
    tpu.vector_store %arg5[%c0_21, %c0_22, %c0_23], %62 {strides = array<i32>} : memref<3x8x128xf32, #tpu.memory_space<vmem>>, vector<1x8x128xf32>,
    %c1 = arith.constant 1 : index
    %c0_24 = arith.constant 0 : index
    %c0_25 = arith.constant 0 : index
    %63 = vector.load %arg5[%c1, %c0_24, %c0_25] : memref<3x8x128xf32, #tpu.memory_space<vmem>>, vector<1x8x128xf32>
    %64 = vector.shape_cast %63 : vector<1x8x128xf32> to vector<8x128xf32>
    %65 = vector.shape_cast %53 : vector<16x128xf32> to vector<2x8x128xf32>
    %cst_26 = arith.constant dense<0.000000e+00> : vector<8x128xf32>
    %66 = vector.multi_reduction <add>, %65, %cst_26 [0] : vector<2x8x128xf32> to vector<8x128xf32>
    %67 = arith.addf %64, %66 : vector<8x128xf32>
    %c1_27 = arith.constant 1 : index
    %c0_28 = arith.constant 0 : index
    %c0_29 = arith.constant 0 : index
    %68 = vector.load %arg5[%c1_27, %c0_28, %c0_29] : memref<3x8x128xf32, #tpu.memory_space<vmem>>, vector<1x8x128xf32>
    %69 = vector.shape_cast %68 : vector<1x8x128xf32> to vector<8x128xf32>
    %70 = vector.shape_cast %67 : vector<8x128xf32> to vector<1x8x128xf32>
    tpu.vector_store %arg5[%c1_27, %c0_28, %c0_29], %70 {strides = array<i32>} : memref<3x8x128xf32, #tpu.memory_space<vmem>>, vector<1x8x128xf32>,
    %c2 = arith.constant 2 : index
    %c0_30 = arith.constant 0 : index
    %c0_31 = arith.constant 0 : index
    %71 = vector.load %arg5[%c2, %c0_30, %c0_31] : memref<3x8x128xf32, #tpu.memory_space<vmem>>, vector<1x8x128xf32>
    %72 = vector.shape_cast %71 : vector<1x8x128xf32> to vector<8x128xf32>
    %73 = vector.shape_cast %54 : vector<16x128xf32> to vector<2x8x128xf32>
    %cst_32 = arith.constant dense<0.000000e+00> : vector<8x128xf32>
    %74 = vector.multi_reduction <add>, %73, %cst_32 [0] : vector<2x8x128xf32> to vector<8x128xf32>
    %75 = arith.addf %72, %74 : vector<8x128xf32>
    %c2_33 = arith.constant 2 : index
    %c0_34 = arith.constant 0 : index
    %c0_35 = arith.constant 0 : index
    %76 = vector.load %arg5[%c2_33, %c0_34, %c0_35] : memref<3x8x128xf32, #tpu.memory_space<vmem>>, vector<1x8x128xf32>
    %77 = vector.shape_cast %76 : vector<1x8x128xf32> to vector<8x128xf32>
    %78 = vector.shape_cast %75 : vector<8x128xf32> to vector<1x8x128xf32>
    tpu.vector_store %arg5[%c2_33, %c0_34, %c0_35], %78 {strides = array<i32>} : memref<3x8x128xf32, #tpu.memory_space<vmem>>, vector<1x8x128xf32>,
    %c0_i32_36 = arith.constant 0 : i32
    %79 = arith.cmpi eq, %arg1, %c0_i32_36 : i32
    %80 = arith.extui %79 : i1 to i32
    %c0_i32_37 = arith.constant 0 : i32
    %81 = arith.cmpi ne, %80, %c0_i32_37 : i32
    scf.if %81 {
      %c0_38 = arith.constant 0 : index
      %c0_39 = arith.constant 0 : index
      %c0_40 = arith.constant 0 : index
      %82 = vector.load %arg5[%c0_38, %c0_39, %c0_40] : memref<3x8x128xf32, #tpu.memory_space<vmem>>, vector<3x8x128xf32>
      %c0_41 = arith.constant 0 : index
      %c0_42 = arith.constant 0 : index
      %c0_43 = arith.constant 0 : index
      %c0_44 = arith.constant 0 : index
      %83 = vector.load %arg4[%c0_41, %c0_42, %c0_43, %c0_44] : memref<1x3x8x128xf32, #tpu.memory_space<vmem>>, vector<1x3x8x128xf32>
      %84 = vector.shape_cast %83 : vector<1x3x8x128xf32> to vector<3x8x128xf32>
      %85 = vector.shape_cast %82 : vector<3x8x128xf32> to vector<1x3x8x128xf32>
      tpu.vector_store %arg4[%c0_41, %c0_42, %c0_43, %c0_44], %85 {strides = array<i32>} : memref<1x3x8x128xf32, #tpu.memory_space<vmem>>, vector<1x3x8x128xf32>,
    } else {
    }
    return
  }
  func.func @transform_0(%arg0: i32, %arg1: i32) -> (i32, i32) {
    %c1_i32 = arith.constant 1 : i32
    %0 = arith.muli %arg0, %c1_i32 : i32
    %1 = arith.addi %0, %arg1 : i32
    %c0_i32 = arith.constant 0 : i32
    %2 = arith.minsi %1, %c0_i32 : i32
    %c0_i32_0 = arith.constant 0 : i32
    %c0_i32_1 = arith.constant 0 : i32
    return %2, %c0_i32_0 : i32, i32
  }
  func.func @transform_1(%arg0: i32, %arg1: i32) -> (i32, i32) {
    %c1_i32 = arith.constant 1 : i32
    %0 = arith.muli %arg0, %c1_i32 : i32
    %1 = arith.addi %0, %arg1 : i32
    %c0_i32 = arith.constant 0 : i32
    %2 = arith.minsi %1, %c0_i32 : i32
    %c0_i32_0 = arith.constant 0 : i32
    %c0_i32_1 = arith.constant 0 : i32
    return %2, %c0_i32_0 : i32, i32
  }
  func.func @transform_2(%arg0: i32, %arg1: i32) -> (i32, i32, i32, i32) {
    %c0_i32 = arith.constant 0 : i32
    %c0_i32_0 = arith.constant 0 : i32
    %c0_i32_1 = arith.constant 0 : i32
    %c0_i32_2 = arith.constant 0 : i32
    return %arg0, %c0_i32, %c0_i32_0, %c0_i32_1 : i32, i32, i32, i32
  }
}

</mosaic_0001>

<llo_original>
// kernel: tpu_custom_call.1
$region0: #{tpu_custom_call.1}
  #allocation0 [shape = 'u32[]', space=smem, size = 0x4, offset = 0x4, fixed_abs, tag = 'smem constant byte address 0x4 - core index']
  #allocation1 [shape = 'u32[72,128]{1,0:T(1,128)}', space=vmem, size = 0x9000, scoped, tag = 'internal scratch']
  #allocation2 [shape = 'f32[3,8,128]{2,1,0:T(8,128)}', space=vmem, size = 0x3000, scoped, tag = 'scratch operand']
  %s0 = inlined_call_operand.hbm [shape: f32[16,128], index: 0, kind: input, shape index: {}]
  %s1 = inlined_call_operand.hbm [shape: f32[16,128], index: 1, kind: input, shape index: {}]
  %s2 = inlined_call_operand.hbm [shape: f32[1,3,8,128], index: 2, kind: output, shape index: {}]
  %s3 = sld [smem:[#allocation0]]
  $region34: #{tpu_custom_call.1} parent=0
    _
  %s5 = ssub.s32 1, %s3
  %s6 = scalar_select 0, %s5, %s3
  $region1: #{tpu_custom_call.1} parent=0
    #allocation3 [shape = 'u8[8192]{0}', space=vmem, size = 0x2000, scoped, tag = 'input window, operand 0, single buffered']
    #allocation4 [shape = 's32[1]{0}', space=sflag, size = 0x4, scoped, tag = 'scoped memory for tpu_custom_call.1']
    #allocation5 [shape = 's32[1]{0}', space=sflag, size = 0x4, scoped, tag = 'scoped memory for tpu_custom_call.1']
    #allocation6 [shape = 'u8[8192]{0}', space=vmem, size = 0x2000, scoped, tag = 'input window, operand 1, single buffered']
    #allocation7 [shape = 's32[1]{0}', space=sflag, size = 0x4, scoped, tag = 'scoped memory for tpu_custom_call.1']
    #allocation8 [shape = 'u8[12288]{0}', space=vmem, size = 0x3000, scoped, tag = 'output window, operand 0, single buffered']
    %7 = vsyncpa [#allocation4], 0
    %8 = vsyncpa [#allocation7], 0
    %9 = vsyncpa [#allocation5], 0
    // Predicated region
    $region2: #{tpu_custom_call.1} parent=1 // pred_check
      _
    $region3: #{tpu_custom_call.1} parent=1 // pred_check_branch
      %11 = sbr.rel (0) target = $region5
    $region4: #{tpu_custom_call.1} parent=1 // pred_region
      %s12 = sadd.s32 0, 0
      %p13 = scmp.lt.s32.totalorder %s12, 0
      %s14 = scalar_select %p13, %s12, 0
      %s15 = smul.u32 2, %s14
      %17 = vsyncadd [#allocation4], 0
      %s18 = smul.addr %s15, 8
      %s19 = scalar_lea.hbm %s0, %s18
      %s20 = sshll.u32 %s19, 4
      %s21 = int_to_ptr.hbm [resolvable:$true] %s20
      %s22 = sshll.u32 [#allocation3], 4
      %s23 = int_to_ptr.vmem [resolvable:$true] %s22
      %28 = dma.hbm_to_vmem [thread:$0]  %s21, 256, %s23, [#allocation4], 128, 128, 8
    $region5: #{tpu_custom_call.1} parent=1 // pred_fallthru
      _
    // Predicated region
    $region6: #{tpu_custom_call.1} parent=1 // pred_check
      _
    $region7: #{tpu_custom_call.1} parent=1 // pred_check_branch
      %30 = sbr.rel (0) target = $region9
    $region8: #{tpu_custom_call.1} parent=1 // pred_region
      %s31 = sadd.s32 0, 0
      %p32 = scmp.lt.s32.totalorder %s31, 0
      %s33 = scalar_select %p32, %s31, 0
      %s34 = smul.u32 2, %s33
      %36 = vsyncadd [#allocation7], 0
      %s37 = smul.addr %s34, 8
      %s38 = scalar_lea.hbm %s1, %s37
      %s39 = sshll.u32 %s38, 4
      %s40 = int_to_ptr.hbm [resolvable:$true] %s39
      %s41 = sshll.u32 [#allocation6], 4
      %s42 = int_to_ptr.vmem [resolvable:$true] %s41
      %47 = dma.hbm_to_vmem [thread:$0]  %s40, 256, %s42, [#allocation7], 128, 128, 8
    $region9: #{tpu_custom_call.1} parent=1 // pred_fallthru
      _
    // Predicated region
    $region10: #{tpu_custom_call.1} parent=1 // pred_check
      _
    $region11: #{tpu_custom_call.1} parent=1 // pred_check_branch
      %49 = sbr.rel (0) target = $region13
    $region12: #{tpu_custom_call.1} parent=1 // pred_region
      %51 = dma.done [#allocation4], 256
    $region13: #{tpu_custom_call.1} parent=1 // pred_fallthru
      _
    // Predicated region
    $region14: #{tpu_custom_call.1} parent=1 // pred_check
      _
    $region15: #{tpu_custom_call.1} parent=1 // pred_check_branch
      %53 = sbr.rel (0) target = $region17
    $region16: #{tpu_custom_call.1} parent=1 // pred_region
      %55 = dma.done [#allocation7], 256
    $region17: #{tpu_custom_call.1} parent=1 // pred_fallthru
      _
    %s56 = sadd.s32 0, 0
    %p57 = scmp.lt.s32.totalorder %s56, 0
    %s58 = scalar_select %p57, %s56, 0
    %s59 = smul.u32 2, %s58
    %s60 = sadd.s32 0, 0
    %p61 = scmp.lt.s32.totalorder %s60, 0
    %s62 = scalar_select %p61, %s60, 0
    %s63 = smul.u32 2, %s62
    %p64 = scmp.eq.s32.totalorder 0, 0
    // Predicated region
    $region18: #{tpu_custom_call.1} parent=1 // pred_check
      %p65 = pneg %p64
    $region19: #{tpu_custom_call.1} parent=1 // pred_check_branch
      %67 = sbr.rel (%p65) target = $region21
    $region20: #{tpu_custom_call.1} parent=1 // pred_region
      %68 = vst [vmem:[#allocation2] sm:$0xff] 0.0
      %69 = vst [vmem:[#allocation2 + $0x8] sm:$0xff] 0.0
      %70 = vst [vmem:[#allocation2 + $0x10] sm:$0xff] 0.0
    $region21: #{tpu_custom_call.1} parent=1 // pred_fallthru
      _
    %v71 = vld [vmem:[#allocation3] sm:$0xff]
    %v72 = vld [vmem:[#allocation3 + $0x8] sm:$0xff]
    %v73 = vld [vmem:[#allocation6] sm:$0xff]
    %v74 = vld [vmem:[#allocation6 + $0x8] sm:$0xff]
    %s75 = sadd.s32 0, 0
    %s76 = smul.u32 %s75, 16
    %v77 = vlaneseq
    %v78 = vshrl.u32 %v77, 7
    %v79 = vadd.s32 %v78, 8
    %v80 = vstv %s76
    %v81 = vadd.s32 %v80, %v78
    %v82 = vadd.s32 %v80, %v79
    %v83 = vlaneseq
    %v84 = vand.u32 %v83, 127
    %vm85 = vcmp.lt.s32.totalorder %v81, 16
    %vm86 = vcmp.lt.s32.totalorder %v82, 16
    %vm87 = vcmp.eq.s32.totalorder %v81, 16
    %vm88 = vcmp.eq.s32.totalorder %v82, 16
    %vm89 = vcmp.lt.s32.totalorder %v84, 0
    %vm90 = vmand %vm87, %vm89
    %vm91 = vmand %vm88, %vm89
    %vm92 = vmor %vm85, %vm90
    %vm93 = vmor %vm86, %vm91
    %v94 = vand.u32 2147483647, %v71
    %v95 = vand.u32 2147483647, %v72
    %v96 = vsub.f32 0.0, %v94
    %v97 = vsub.f32 0.0, %v95
    %v98 = vmul.f32 %v96, 1.442695
    %v99 = vpow.pop %v98
    %v100 = vmul.f32 %v97, 1.442695
    %v101 = vpow.pop %v100
    %v102 = vadd.f32 %v99, 1.0
    %v103 = vlog2.pop %v102
    %v104 = vmul.f32 %v103, 0.6931472
    %v105 = vmul.f32 -0.5, %v99
    %v106 = vadd.f32 %v105, 1.0
    %v107 = vmul.f32 %v106, %v99
    %v108 = vand.u32 2147483647, %v99
    %vm109 = vcmp.lt.f32.partialorder %v108, 0.0004427343
    %v110 = vsel %vm109, %v107, %v104
    %v111 = vadd.f32 %v101, 1.0
    %v112 = vlog2.pop %v111
    %v113 = vmul.f32 %v112, 0.6931472
    %v114 = vmul.f32 -0.5, %v101
    %v115 = vadd.f32 %v114, 1.0
    %v116 = vmul.f32 %v115, %v101
    %v117 = vand.u32 2147483647, %v101
    %vm118 = vcmp.lt.f32.partialorder %v117, 0.0004427343
    %v119 = vsel %vm118, %v116, %v113
    %vm120 = vcmp.ge.f32.partialorder %v71, 0.0
    %vm121 = vcmp.ge.f32.partialorder %v72, 0.0
    %v122 = vsel %vm120, 1.0, %v99
    %v123 = vsel %vm121, 1.0, %v101
    %v124 = vadd.f32 %v99, 1.0
    %v125 = vadd.f32 %v101, 1.0
    %v126 = vrcp.pop %v124
    %v127 = vmul.f32 %v124, %v126
    %v128 = vsub.f32 1.0, %v127
    %v129 = vmul.f32 %v126, %v128
    %v130 = vadd.f32 %v126, %v129
    %vm131 = vweird.f32 %v124
    %vm132 = vweird.f32 %v126
    %vm133 = vmor %vm131, %vm132
    %v134 = vsel %vm133, %v126, %v130
    %v135 = vand.u32 2147483647, %v124
    %vm136 = vcmp.eq.f32.partialorder %v135, 8.507059e+37
    %v137 = vand.u32 %v124, 2147483648
    %v138 = vor.u32 1.1754944e-38, %v137
    %v139 = vsel %vm136, %v138, %v134
    %v140 = vmul.f32 %v122, %v139
    %v141 = vrcp.pop %v125
    %v142 = vmul.f32 %v125, %v141
    %v143 = vsub.f32 1.0, %v142
    %v144 = vmul.f32 %v141, %v143
    %v145 = vadd.f32 %v141, %v144
    %vm146 = vweird.f32 %v125
    %vm147 = vweird.f32 %v141
    %vm148 = vmor %vm146, %vm147
    %v149 = vsel %vm148, %v141, %v145
    %v150 = vand.u32 2147483647, %v125
    %vm151 = vcmp.eq.f32.partialorder %v150, 8.507059e+37
    %v152 = vand.u32 %v125, 2147483648
    %v153 = vor.u32 1.1754944e-38, %v152
    %v154 = vsel %vm151, %v153, %v149
    %v155 = vmul.f32 %v123, %v154
    %v156 = vsub.f32 0.0, %v71
    %v157 = vsub.f32 0.0, %v72
    %v158 = vmax.f32 %v156, 0.0
    %v159 = vmax.f32 %v157, 0.0
    %v160 = vadd.f32 %v158, %v110
    %v161 = vadd.f32 %v159, %v119
    %v162 = vmin.f32 %v160, 100.0
    %v163 = vmin.f32 %v161, 100.0
    %v164 = vmax.f32 %v71, 0.0
    %v165 = vmax.f32 %v72, 0.0
    %v166 = vadd.f32 %v164, %v110
    %v167 = vadd.f32 %v165, %v119
    %v168 = vmin.f32 %v166, 100.0
    %v169 = vmin.f32 %v167, 100.0
    %v170 = vmul.f32 %v73, %v162
    %v171 = vmul.f32 %v74, %v163
    %v172 = vsub.f32 1.0, %v73
    %v173 = vsub.f32 1.0, %v74
    %v174 = vmul.f32 %v172, %v168
    %v175 = vmul.f32 %v173, %v169
    %v176 = vadd.f32 %v170, %v174
    %v177 = vadd.f32 %v171, %v175
    %v178 = vmul.f32 %v140, %v73
    %v179 = vmul.f32 %v155, %v74
    %v180 = vsel %vm92, %v178, 0.0
    %v181 = vsel %vm93, %v179, 0.0
    %v182 = vadd.f32 %v140, %v73
    %v183 = vadd.f32 %v155, %v74
    %v184 = vsel %vm92, %v182, 0.0
    %v185 = vsel %vm93, %v183, 0.0
    %v186 = vsel %vm92, %v176, 0.0
    %v187 = vsel %vm93, %v177, 0.0
    %v188 = vld [vmem:[#allocation2] sm:$0xff]
    %v189 = vadd.f32 %v180, %v181
    %v190 = vadd.f32 %v188, %v189
    %191 = vst [vmem:[#allocation2] sm:$0xff] %v190
    %s192 = scalar_lea.vmem [#allocation2], 8
    %v193 = vld [vmem:[%s192] sm:$0xff]
    %v194 = vadd.f32 %v184, %v185
    %v195 = vadd.f32 %v193, %v194
    %196 = vst [vmem:[%s192] sm:$0xff] %v195
    %s197 = scalar_lea.vmem [#allocation2], 16
    %v198 = vld [vmem:[%s197] sm:$0xff]
    %v199 = vadd.f32 %v186, %v187
    %v200 = vadd.f32 %v198, %v199
    %201 = vst [vmem:[%s197] sm:$0xff] %v200
    // Predicated region
    $region22: #{tpu_custom_call.1} parent=1 // pred_check
      %p202 = pneg %p64
    $region23: #{tpu_custom_call.1} parent=1 // pred_check_branch
      %204 = sbr.rel (%p202) target = $region25
    $region24: #{tpu_custom_call.1} parent=1 // pred_region
      %v205 = vld [vmem:[#allocation2] sm:$0xff]
      %v206 = vld [vmem:[#allocation2 + $0x8] sm:$0xff]
      %v207 = vld [vmem:[#allocation2 + $0x10] sm:$0xff]
      %208 = vst [vmem:[#allocation8] sm:$0xff] %v205
      %209 = vst [vmem:[#allocation8 + $0x8] sm:$0xff] %v206
      %210 = vst [vmem:[#allocation8 + $0x10] sm:$0xff] %v207
    $region25: #{tpu_custom_call.1} parent=1 // pred_fallthru
      _
    // Predicated region
    $region26: #{tpu_custom_call.1} parent=1 // pred_check
      _
    $region27: #{tpu_custom_call.1} parent=1 // pred_check_branch
      %212 = sbr.rel (0) target = $region29
    $region28: #{tpu_custom_call.1} parent=1 // pred_region
      %214 = vsyncadd [#allocation5], 0
      %s215 = sshll.u32 [#allocation8], 4
      %s216 = int_to_ptr.vmem [resolvable:$true] %s215
      %s217 = sshll.u32 %s2, 4
      %s218 = int_to_ptr.hbm [resolvable:$true] %s217
      %223 = dma.vmem_to_hbm [thread:$0]  %s216, 384, %s218, [#allocation5], 128, 128, 8
    $region29: #{tpu_custom_call.1} parent=1 // pred_fallthru
      _
    // Predicated region
    $region30: #{tpu_custom_call.1} parent=1 // pred_check
      _
    $region31: #{tpu_custom_call.1} parent=1 // pred_check_branch
      %225 = sbr.rel (0) target = $region33
    $region32: #{tpu_custom_call.1} parent=1 // pred_region
      %227 = dma.done [#allocation5], 384
    $region33: #{tpu_custom_call.1} parent=1 // pred_fallthru
      _
    %228 = vsyncpa [#allocation4], 1
    %229 = vsyncpa [#allocation7], 1
    %230 = vsyncpa [#allocation5], 1

</llo_original>
